<compile_context>
chip_gen: v6e
topology: v6e:2x2x1
jax: 0.10.0
libtpu: 0.0.40
codegen_flags: <defaults>
</compile_context>

<pallas_src>
import math

import jax
import jax.numpy as jnp
from jax.experimental import pallas as pl
from jax.experimental.pallas import tpu as pltpu

MONTH_SIZE, DAY_SIZE, WEEKDAY_SIZE, HOUR_SIZE = 13, 32, 7, 24
# Row offsets of each sub-table inside the fused [128, d_model] table.
MONTH_OFF, DAY_OFF, WEEKDAY_OFF, HOUR_OFF = 0, 13, 45, 52
FUSED_ROWS = 128  # 76 real rows, zero-padded to a full MXU contraction dim.


def fixed_embedding_table(c_in, d_model):
    """Deterministic sinusoidal table, identical to FixedEmbedding.__init__."""
    position = jnp.arange(c_in, dtype=jnp.float32)[:, None]
    div_term = jnp.exp(
        jnp.arange(0, d_model, 2, dtype=jnp.float32) * -(math.log(10000.0) / d_model)
    )
    w = jnp.zeros((c_in, d_model), jnp.float32)
    w = w.at[:, 0::2].set(jnp.sin(position * div_term))
    w = w.at[:, 1::2].set(jnp.cos(position * div_term))
    return w


def fuse_tables(month_w, day_w, wday_w, hour_w):
    """Pack the four [V, d_model] tables into one zero-padded [128, d_model]."""
    d_model = month_w.shape[1]
    t = jnp.zeros((FUSED_ROWS, d_model), jnp.float32)
    t = t.at[MONTH_OFF:MONTH_OFF + MONTH_SIZE].set(month_w)
    t = t.at[DAY_OFF:DAY_OFF + DAY_SIZE].set(day_w)
    t = t.at[WEEKDAY_OFF:WEEKDAY_OFF + WEEKDAY_SIZE].set(wday_w)
    t = t.at[HOUR_OFF:HOUR_OFF + HOUR_SIZE].set(hour_w)
    return t


def _temporal_embedding_kernel(x_ref, table_ref, out_ref):
    # x_ref:     [TM, F] int32 raw time features (month, day, weekday, hour, ...)
    # table_ref: [128, d_model] f32 fused table (VMEM-resident across steps)
    # out_ref:   [TM, d_model] f32
    ids = x_ref[...]
    tm = ids.shape[0]
    # Single lane-full iota, reused for all four masks.
    cols = jax.lax.broadcasted_iota(jnp.int32, (tm, FUSED_ROWS), 1)
    # Multi-hot [TM, 128]: four 1.0s per row (sub-table row ranges are disjoint).
    # The per-feature row offsets are added on the narrow [TM,1] columns here,
    # so no wrapper-side index preprocessing pass is needed.
    hot = (
        (ids[:, 0:1] + MONTH_OFF == cols)
        | (ids[:, 1:2] + DAY_OFF == cols)
        | (ids[:, 2:3] + WEEKDAY_OFF == cols)
        | (ids[:, 3:4] + HOUR_OFF == cols)
    ).astype(jnp.float32)
    # One K=128 matmul does all four gathers plus the 4-way sum on the MXU.
    # HIGHEST precision: exact f32 (0/1 * table), keeps 1e-5 parity with the
    # f32 reference.  (On v5e, a bf16 fused table would be ~1.3-1.5x faster on
    # the MXU at ~1e-3 accuracy -- deliberate trade-off, not taken here.)
    out_ref[...] = jnp.dot(
        hot,
        table_ref[...],
        precision=jax.lax.Precision.HIGHEST,
        preferred_element_type=jnp.float32,
    )


def _pick_token_tile(n, d_model):
    """Token tile: ~4 MiB output block (x2 buffers), rows in [256, 4096]."""
    target_rows = (4 * 1024 * 1024) // max(1, 4 * d_model)
    tm = min(4096, max(256, (target_rows // 8) * 8))
    n8 = ((n + 7) // 8) * 8
    if n8 <= tm:
        # Small problem: split into (at least) 2 blocks so both of v7x's
        # TensorCores get work under the "parallel" grid axis.
        return max(8, ((n8 // 2 + 7) // 8) * 8)
    return tm


def temporal_embedding(x, fused_table):
    """x: [B, L, F>=4] integer array. Returns [B, L, d_model] float32."""
    b, l, f = x.shape
    d_model = fused_table.shape[1]
    n = b * l

    if x.dtype != jnp.int32:
        x = x.astype(jnp.int32)  # no-op for int32 inputs (common case)
    feats = x.reshape(n, f)      # free reshape of a contiguous array

    tm = _pick_token_tile(n, d_model)
    grid = (pl.cdiv(n, tm),)     # ragged last block: Pallas masks its writes

    out = pl.pallas_call(
        _temporal_embedding_kernel,
        out_shape=jax.ShapeDtypeStruct((n, d_model), jnp.float32),
        grid_spec=pltpu.PrefetchScalarGridSpec(
            num_scalar_prefetch=0,
            grid=grid,
            in_specs=[
                # Per-tile token features (all F columns; cols 0..3 used).
                pl.BlockSpec((tm, f), lambda i: (i, 0)),
                # Fused table: constant block index -> stays resident in VMEM.
                pl.BlockSpec((FUSED_ROWS, d_model), lambda i: (0, 0)),
            ],
            out_specs=pl.BlockSpec((tm, d_model), lambda i: (i, 0)),
        ),
        compiler_params=pltpu.CompilerParams(
            dimension_semantics=("parallel",),
            # Explicit scoped-VMEM limit: safe headroom for large tiles on v5e
            # (16 MiB default) while staying within v7x's 64 MiB physical VMEM.
            vmem_limit_bytes=32 * 1024 * 1024,
        ),
    )(feats, fused_table)

    # No slicing needed: out is already [N, d_model]; reshape is a free bitcast.
    return out.reshape(b, l, d_model)


if __name__ == "__main__":
    # d_model multiple of 128 -> lane-dense (unmasked) output stores.
    # L chosen so N=26 is not a multiple of the tile -> exercises the ragged
    # (masked) last output block and the 2-block small-problem split.
    B, L, D_MODEL = 2, 13, 128

    key = jax.random.PRNGKey(0)
    k1, k2, k3, k4 = jax.random.split(key, 4)
    month = jax.random.randint(k1, (B, L, 1), 0, MONTH_SIZE, jnp.int32)
    day = jax.random.randint(k2, (B, L, 1), 0, DAY_SIZE, jnp.int32)
    wday = jax.random.randint(k3, (B, L, 1), 0, WEEKDAY_SIZE, jnp.int32)
    hour = jax.random.randint(k4, (B, L, 1), 0, HOUR_SIZE, jnp.int32)
    x = jnp.concatenate([month, day, wday, hour], axis=-1)  # [B, L, 4]

    # Fixed (non-trainable) sinusoidal tables, built deterministically in-script.
    month_w = fixed_embedding_table(MONTH_SIZE, D_MODEL)
    day_w = fixed_embedding_table(DAY_SIZE, D_MODEL)
    wday_w = fixed_embedding_table(WEEKDAY_SIZE, D_MODEL)
    hour_w = fixed_embedding_table(HOUR_SIZE, D_MODEL)
    fused = fuse_tables(month_w, day_w, wday_w, hour_w)

    out = temporal_embedding(x, fused)
    out = jax.block_until_ready(out)

    # Pure-JAX reference (same semantics as the PyTorch forward).
    ref = (
        month_w[x[:, :, 0]]
        + day_w[x[:, :, 1]]
        + wday_w[x[:, :, 2]]
        + hour_w[x[:, :, 3]]
    )
    assert out.shape == (B, L, D_MODEL)
    assert out.dtype == jnp.float32
    assert jnp.allclose(out, ref, atol=1e-5), "mismatch vs reference"
    print("KERNEL_OK")
</pallas_src>

<mosaic_0001>
module attributes {stable_mosaic.version = 11 : i64} {
  func.func @_temporal_embedding_kernel(%arg0: i32, %arg1: memref<16x4xi32, #tpu.memory_space<vmem>>, %arg2: memref<128x128xf32, #tpu.memory_space<vmem>>, %arg3: memref<16x128xf32, #tpu.memory_space<vmem>>) attributes {dimension_semantics = [#tpu.dimension_semantics<parallel>], iteration_bounds = array<i64: 2>, scalar_prefetch = 0 : i64, scratch_operands = 0 : i64, tpu.core_type = #tpu.core_type<tc>, window_params = [{transform_indices = @transform_0, window_bounds = array<i64: 16, 4>}, {pipeline_mode = #tpu.pipeline_mode<synchronous>, transform_indices = @transform_1, window_bounds = array<i64: 128, 128>}, {transform_indices = @transform_2, window_bounds = array<i64: 16, 128>}]} {
    %c0 = arith.constant 0 : index
    %c0_0 = arith.constant 0 : index
    %0 = vector.load %arg1[%c0, %c0_0] : memref<16x4xi32, #tpu.memory_space<vmem>>, vector<16x4xi32>
    %1 = tpu.iota {dimensions = array<i32: 1>} : vector<16x128xi32>
    %2 = vector.extract_strided_slice %0 {offsets = [0, 0], sizes = [16, 1], strides = [1, 1]} : vector<16x4xi32> to vector<16x1xi32>
    %c0_i32 = arith.constant 0 : i32
    %3 = vector.broadcast %c0_i32 : i32 to vector<16x1xi32>
    %4 = arith.addi %2, %3 : vector<16x1xi32>
    %5 = vector.broadcast %4 : vector<16x1xi32> to vector<16x128xi32>
    %6 = arith.cmpi eq, %5, %1 : vector<16x128xi32>
    %7 = vector.extract_strided_slice %0 {offsets = [0, 1], sizes = [16, 1], strides = [1, 1]} : vector<16x4xi32> to vector<16x1xi32>
    %c13_i32 = arith.constant 13 : i32
    %8 = vector.broadcast %c13_i32 : i32 to vector<16x1xi32>
    %9 = arith.addi %7, %8 : vector<16x1xi32>
    %10 = vector.broadcast %9 : vector<16x1xi32> to vector<16x128xi32>
    %11 = arith.cmpi eq, %10, %1 : vector<16x128xi32>
    %12 = arith.ori %6, %11 : vector<16x128xi1>
    %13 = vector.extract_strided_slice %0 {offsets = [0, 2], sizes = [16, 1], strides = [1, 1]} : vector<16x4xi32> to vector<16x1xi32>
    %c45_i32 = arith.constant 45 : i32
    %14 = vector.broadcast %c45_i32 : i32 to vector<16x1xi32>
    %15 = arith.addi %13, %14 : vector<16x1xi32>
    %16 = vector.broadcast %15 : vector<16x1xi32> to vector<16x128xi32>
    %17 = arith.cmpi eq, %16, %1 : vector<16x128xi32>
    %18 = arith.ori %12, %17 : vector<16x128xi1>
    %19 = vector.extract_strided_slice %0 {offsets = [0, 3], sizes = [16, 1], strides = [1, 1]} : vector<16x4xi32> to vector<16x1xi32>
    %c52_i32 = arith.constant 52 : i32
    %20 = vector.broadcast %c52_i32 : i32 to vector<16x1xi32>
    %21 = arith.addi %19, %20 : vector<16x1xi32>
    %22 = vector.broadcast %21 : vector<16x1xi32> to vector<16x128xi32>
    %23 = arith.cmpi eq, %22, %1 : vector<16x128xi32>
    %24 = arith.ori %18, %23 : vector<16x128xi1>
    %25 = arith.extui %24 : vector<16x128xi1> to vector<16x128xi32>
    %26 = arith.sitofp %25 : vector<16x128xi32> to vector<16x128xf32>
    %c0_1 = arith.constant 0 : index
    %c0_2 = arith.constant 0 : index
    %27 = vector.load %arg2[%c0_1, %c0_2] : memref<128x128xf32, #tpu.memory_space<vmem>>, vector<128x128xf32>
    %cst = arith.constant dense<0.000000e+00> : vector<16x128xf32>
    %28 = tpu.matmul %26, %27, %cst {dimension_numbers = #tpu.dot_dimension_numbers<[1], [0], [0], [1], [0, 0, 1, 1], [], []>, precision = #tpu.contract_precision<fp32>} : vector<16x128xf32>, vector<128x128xf32>, vector<16x128xf32> -> vector<16x128xf32>
    %c0_3 = arith.constant 0 : index
    %c0_4 = arith.constant 0 : index
    %29 = vector.load %arg3[%c0_3, %c0_4] : memref<16x128xf32, #tpu.memory_space<vmem>>, vector<16x128xf32>
    tpu.vector_store %arg3[%c0_3, %c0_4], %28 {strides = array<i32>} : memref<16x128xf32, #tpu.memory_space<vmem>>, vector<16x128xf32>,
    return
  }
  func.func @transform_0(%arg0: i32) -> (i32, i32) {
    %c0_i32 = arith.constant 0 : i32
    %c0_i32_0 = arith.constant 0 : i32
    return %arg0, %c0_i32 : i32, i32
  }
  func.func @transform_1(%arg0: i32) -> (i32, i32) {
    %c0_i32 = arith.constant 0 : i32
    %c0_i32_0 = arith.constant 0 : i32
    %c0_i32_1 = arith.constant 0 : i32
    return %c0_i32, %c0_i32_0 : i32, i32
  }
  func.func @transform_2(%arg0: i32) -> (i32, i32) {
    %c0_i32 = arith.constant 0 : i32
    %c0_i32_0 = arith.constant 0 : i32
    return %arg0, %c0_i32 : i32, i32
  }
}

</mosaic_0001>

<llo_original>
// kernel: tpu_custom_call.1
$region0: #{tpu_custom_call.1}
  #allocation0 [shape = 'u32[]', space=smem, size = 0x4, offset = 0x4, fixed_abs, tag = 'smem constant byte address 0x4 - core index']
  #allocation1 [shape = 'u32[144,128]{1,0:T(1,128)}', space=vmem, size = 0x12000, scoped, tag = 'internal scratch']
  %s0 = inlined_call_operand.vmem [shape: s32[26,4], index: 0, kind: input, shape index: {}]
  %s1 = inlined_call_operand.hbm [shape: f32[128,128], index: 1, kind: input, shape index: {}]
  %s2 = inlined_call_operand.hbm [shape: f32[26,128], index: 2, kind: output, shape index: {}]
  %s3 = sld [smem:[#allocation0]]
  $region45: #{tpu_custom_call.1} parent=0
    _
  %s5 = ssub.s32 1, %s3
  %s6 = scalar_select 0, %s5, %s3
  $region1: #{tpu_custom_call.1} parent=0
    #allocation2 [shape = 'u8[65536]{0}', space=vmem, size = 0x10000, scoped, tag = 'input window, operand 1, single buffered']
    #allocation3 [shape = 's32[2]{0}', space=sflag, size = 0x8, scoped, tag = 'scoped memory for tpu_custom_call.1']
    #allocation4 [shape = 's32[2]{0}', space=sflag, size = 0x8, scoped, tag = 'scoped memory for tpu_custom_call.1']
    #allocation5 [shape = 'u8[16384]{0}', space=vmem, size = 0x4000, scoped, tag = 'output window, operand 0']
    %7 = vsyncpa [#allocation3], 0
    %8 = vsyncpa [#allocation4], 0
    %s9 = scalar_lea.sflag [#allocation4], 1
    %10 = vsyncpa %s9, 0
    loop: start=0, step=1, limit=4
    $region2: #{tpu_custom_call.1} parent=1 // loop_pre_header
      _
    $region3: #{tpu_custom_call.1} parent=1 // loop_header
      %s12 = sphi 0, %s16
      %p13 = scmp.ge.s32.totalorder %s12, 4
      %s22 = sphi 0, %s24
      %s25 = sphi 0, %s22
      %s26 = sphi 0, %s25
      %s42 = sphi 0, %s26
      %s46 = sphi 0, %s46
      %s48 = sphi 0, %s46
      %s49 = sphi 0, %s48
      %s63 = sphi 0, %s49
      %s69 = sphi 0, %s71
      %s72 = sphi 0, %s69
      %s73 = sphi 0, %s72
      %s89 = sphi 0, %s73
    $region4: #{tpu_custom_call.1} parent=1 // loop_header_branch
      %15 = sbr.rel (%p13) target = $region8
    $region5: #{tpu_custom_call.1} parent=1 // loop_body
      %s17 = ssub.s32 %s12, 1
      %s18 = ssub.s32 %s12, 2
      %s19 = sadd.s32 %s12, 1
      %s20 = ssub.s32 %s12, %s19
      %p21 = scmp.eq.s32.totalorder %s20, 0
      %s23 = sadd.s32 %s22, 1
      %s24 = scalar_select %p21, %s22, %s23
      %p27 = pneg %p21
      %p28 = scmp.eq.s32.totalorder %s12, 1
      %p29 = por %p27, %p28
      %p30 = scmp.ne.s32.totalorder %s22, %s25
      %p31 = scmp.eq.s32.totalorder %s12, 0
      %p32 = por %p30, %p31
      %p33 = scmp.ne.s32.totalorder %s22, %s25
      %p34 = scmp.eq.s32.totalorder %s17, 1
      %p35 = por %p33, %p34
      %p36 = scmp.ne.s32.totalorder %s25, %s26
      %p37 = scmp.eq.s32.totalorder %s17, 0
      %p38 = por %p36, %p37
      %p39 = scmp.ne.s32.totalorder %s25, %s26
      %p40 = scmp.eq.s32.totalorder %s18, 1
      %p41 = por %p39, %p40
      %p43 = scmp.ne.s32.totalorder %s26, %s42
      %p44 = scmp.eq.s32.totalorder %s18, 0
      %p45 = por %p43, %p44
      %s47 = sadd.s32 %s46, 1
      %p50 = scmp.eq.s32.totalorder %s12, 1
      %p51 = scmp.ne.s32.totalorder %s46, %s48
      %p52 = scmp.eq.s32.totalorder %s12, 0
      %p53 = por %p51, %p52
      %p54 = scmp.ne.s32.totalorder %s46, %s48
      %p55 = scmp.eq.s32.totalorder %s17, 1
      %p56 = por %p54, %p55
      %p57 = scmp.ne.s32.totalorder %s48, %s49
      %p58 = scmp.eq.s32.totalorder %s17, 0
      %p59 = por %p57, %p58
      %p60 = scmp.ne.s32.totalorder %s48, %s49
      %p61 = scmp.eq.s32.totalorder %s18, 1
      %p62 = por %p60, %p61
      %p64 = scmp.ne.s32.totalorder %s49, %s63
      %p65 = scmp.eq.s32.totalorder %s18, 0
      %p66 = por %p64, %p65
      %s67 = ssub.s32 %s12, %s19
      %p68 = scmp.eq.s32.totalorder %s67, 0
      %s70 = sadd.s32 %s69, 1
      %s71 = scalar_select %p68, %s69, %s70
      %p74 = pneg %p68
      %p75 = scmp.eq.s32.totalorder %s12, 1
      %p76 = por %p74, %p75
      %p77 = scmp.ne.s32.totalorder %s69, %s72
      %p78 = scmp.eq.s32.totalorder %s12, 0
      %p79 = por %p77, %p78
      %p80 = scmp.ne.s32.totalorder %s69, %s72
      %p81 = scmp.eq.s32.totalorder %s17, 1
      %p82 = por %p80, %p81
      %p83 = scmp.ne.s32.totalorder %s72, %s73
      %p84 = scmp.eq.s32.totalorder %s17, 0
      %p85 = por %p83, %p84
      %p86 = scmp.ne.s32.totalorder %s72, %s73
      %p87 = scmp.eq.s32.totalorder %s18, 1
      %p88 = por %p86, %p87
      %p90 = scmp.ne.s32.totalorder %s73, %s89
      %p91 = scmp.eq.s32.totalorder %s18, 0
      %p92 = por %p90, %p91
      %p93 = scmp.le.s32.totalorder 1, %s12
      %p94 = scmp.lt.s32.totalorder %s12, 3
      %p95 = pnand %p93, %p94
      %p96 = pneg %p95
      // Predicated region
      $region9: #{tpu_custom_call.1} parent=5 // pred_check
        _
      $region10: #{tpu_custom_call.1} parent=5 // pred_check_branch
        %98 = sbr.rel (%p95) target = $region12
      $region11: #{tpu_custom_call.1} parent=5 // pred_region
        %s99 = ssub.s32 %s12, 1
        // Predicated region
        $region13: #{tpu_custom_call.1} parent=11 // pred_check
          %p100 = pneg %p59
        $region14: #{tpu_custom_call.1} parent=11 // pred_check_branch
          %102 = sbr.rel (%p100) target = $region16
        $region15: #{tpu_custom_call.1} parent=11 // pred_region
          %s104 = ssub.s32 2048, 2048
          %105 = vsyncadd [#allocation3], %s104
          %s106 = sshll.u32 [#allocation2], 4
          %s107 = int_to_ptr.vmem [resolvable:$true] %s106
          %112 = dma.hbm_to_vmem [thread:$0]  %s1, 2048, %s107, [#allocation3], 128, 128, 8
        $region16: #{tpu_custom_call.1} parent=11 // pred_fallthru
          _
      $region12: #{tpu_custom_call.1} parent=5 // pred_fallthru
        _
      %p113 = scmp.lt.s32.totalorder %s12, 2
      // Predicated region
      $region17: #{tpu_custom_call.1} parent=5 // pred_check
        %p114 = pneg %p113
      $region18: #{tpu_custom_call.1} parent=5 // pred_check_branch
        %116 = sbr.rel (%p114) target = $region20
      $region19: #{tpu_custom_call.1} parent=5 // pred_region
        // Predicated region
        $region21: #{tpu_custom_call.1} parent=19 // pred_check
          %p117 = pneg %p32
        $region22: #{tpu_custom_call.1} parent=19 // pred_check_branch
          %119 = sbr.rel (%p117) target = $region24
        $region23: #{tpu_custom_call.1} parent=19 // pred_region
          %s120 = smul.u32 2, %s12
          %p121 = scmp.lt.s32.totalorder %s120, 3
          %s122 = scalar_select %p121, %s120, 3
          %s123 = smul.addr %s122, 8
          %s124 = scalar_lea.vmem %s0, %s123
          %s125 = smul.u32 2, %s12
        $region24: #{tpu_custom_call.1} parent=19 // pred_fallthru
          _
      $region20: #{tpu_custom_call.1} parent=5 // pred_fallthru
        _
      %p126 = scmp.le.s32.totalorder 1, %s12
      %p127 = scmp.lt.s32.totalorder %s12, 3
      %p128 = pnand %p126, %p127
      %p129 = pneg %p128
      // Predicated region
      $region25: #{tpu_custom_call.1} parent=5 // pred_check
        _
      $region26: #{tpu_custom_call.1} parent=5 // pred_check_branch
        %131 = sbr.rel (%p128) target = $region28
      $region27: #{tpu_custom_call.1} parent=5 // pred_region
        %s132 = ssub.s32 %s12, 1
        // Predicated region
        $region29: #{tpu_custom_call.1} parent=27 // pred_check
          %p133 = pneg %p59
        $region30: #{tpu_custom_call.1} parent=27 // pred_check_branch
          %135 = sbr.rel (%p133) target = $region32
        $region31: #{tpu_custom_call.1} parent=27 // pred_region
          %136 = dma.done [#allocation3], 2048
        $region32: #{tpu_custom_call.1} parent=27 // pred_fallthru
          _
        %s137 = smul.u32 2, %s17
        %p138 = scmp.lt.s32.totalorder %s137, 3
        %s139 = scalar_select %p138, %s137, 3
        %s140 = smul.addr %s139, 8
        %s141 = scalar_lea.vmem %s0, %s140
        %p142 = pneg %p38
        %p143 = pneg %p35
        %p144 = pneg %p59
        %p145 = pneg %p56
        %p146 = pneg %p85
        %p147 = pneg %p82
        %s148 = sand.u32 %s72, 1
        %s149 = scalar_lea.sflag [#allocation4], %s148
        %s150 = sand.u32 %s72, 1
        %s151 = smul.addr %s150, 16
        %s152 = scalar_lea.vmem [#allocation5], %s151
        %s153 = smul.u32 2, %s17
        %p154 = scmp.lt.s32.totalorder %s153, 3
        %s155 = scalar_select %p154, %s153, 3
        %s156 = smul.addr %s155, 8
        %s157 = scalar_lea.vmem %s0, %s156
        %s158 = smul.u32 2, %s17
        %s159 = smul.u32 2, %s17
        %v160 = vld [vmem:[%s157] sm:$0xff]
        %v161 = vld [vmem:[%s157 + $0x8] sm:$0xff]
        %v162 = vlaneseq
        %v163 = vand.u32 %v162, 127
        %164 = vset.pattern.permute.xlu0 0
        %165 = vperm.xlu0 %164, %v160
        %v166 = vpop.permute.xlu0 %165
        %167 = vset.pattern.permute.xlu0 0
        %168 = vperm.xlu0 %167, %v161
        %v169 = vpop.permute.xlu0 %168
        %vm170 = vcmp.eq.s32.totalorder %v166, %v163
        %vm171 = vcmp.eq.s32.totalorder %v169, %v163
        %v172 = vadd.s32 %v160, 13
        %v173 = vadd.s32 %v161, 13
        %174 = vset.pattern.permute.xlu0 1
        %175 = vperm.xlu0 %174, %v172
        %v176 = vpop.permute.xlu0 %175
        %177 = vset.pattern.permute.xlu0 1
        %178 = vperm.xlu0 %177, %v173
        %v179 = vpop.permute.xlu0 %178
        %vm180 = vcmp.eq.s32.totalorder %v176, %v163
        %vm181 = vcmp.eq.s32.totalorder %v179, %v163
        %vm182 = vmor %vm170, %vm180
        %vm183 = vmor %vm171, %vm181
        %v184 = vadd.s32 %v160, 45
        %v185 = vadd.s32 %v161, 45
        %186 = vset.pattern.permute.xlu0 2
        %187 = vperm.xlu0 %186, %v184
        %v188 = vpop.permute.xlu0 %187
        %189 = vset.pattern.permute.xlu0 2
        %190 = vperm.xlu0 %189, %v185
        %v191 = vpop.permute.xlu0 %190
        %vm192 = vcmp.eq.s32.totalorder %v188, %v163
        %vm193 = vcmp.eq.s32.totalorder %v191, %v163
        %vm194 = vmor %vm182, %vm192
        %vm195 = vmor %vm183, %vm193
        %v196 = vadd.s32 %v160, 52
        %v197 = vadd.s32 %v161, 52
        %198 = vset.pattern.permute.xlu0 3
        %199 = vperm.xlu0 %198, %v196
        %v200 = vpop.permute.xlu0 %199
        %201 = vset.pattern.permute.xlu0 3
        %202 = vperm.xlu0 %201, %v197
        %v203 = vpop.permute.xlu0 %202
        %vm204 = vcmp.eq.s32.totalorder %v200, %v163
        %vm205 = vcmp.eq.s32.totalorder %v203, %v163
        %vm206 = vmor %vm194, %vm204
        %vm207 = vmor %vm195, %vm205
        %v208 = vsel %vm206, 1, 0
        %v209 = vsel %vm207, 1, 0
        %v210 = vcvt.s32.f32 %v208
        %v211 = vcvt.s32.f32 %v209
        %v212 = vld [vmem:[#allocation2] sm:$0xff]
        %v213 = vld [vmem:[#allocation2 + $0x8] sm:$0xff]
        %v214 = vld [vmem:[#allocation2 + $0x10] sm:$0xff]
        %v215 = vld [vmem:[#allocation2 + $0x18] sm:$0xff]
        %v216 = vld [vmem:[#allocation2 + $0x20] sm:$0xff]
        %v217 = vld [vmem:[#allocation2 + $0x28] sm:$0xff]
        %v218 = vld [vmem:[#allocation2 + $0x30] sm:$0xff]
        %v219 = vld [vmem:[#allocation2 + $0x38] sm:$0xff]
        %v220 = vld [vmem:[#allocation2 + $0x40] sm:$0xff]
        %v221 = vld [vmem:[#allocation2 + $0x48] sm:$0xff]
        %v222 = vld [vmem:[#allocation2 + $0x50] sm:$0xff]
        %v223 = vld [vmem:[#allocation2 + $0x58] sm:$0xff]
        %v224 = vld [vmem:[#allocation2 + $0x60] sm:$0xff]
        %v225 = vld [vmem:[#allocation2 + $0x68] sm:$0xff]
        %v226 = vld [vmem:[#allocation2 + $0x70] sm:$0xff]
        %v227 = vld [vmem:[#allocation2 + $0x78] sm:$0xff]
        %228 = vmatprep.subr.mxu0 0.0
        %v229 = vand.u32 %v227, 4294901760
        %230 = vmatpush1.msra.mxu0 %v229
        %231 = vmatprep.subr.mxu0 0.0
        %v232 = vand.u32 %v226, 4294901760
        %233 = vmatpush1.msra.mxu0 %v232
        %234 = vmatprep.subr.mxu0 0.0
        %v235 = vand.u32 %v225, 4294901760
        %236 = vmatpush1.msra.mxu0 %v235
        %237 = vmatprep.subr.mxu0 0.0
        %v238 = vand.u32 %v224, 4294901760
        %239 = vmatpush1.msra.mxu0 %v238
        %240 = vmatprep.subr.mxu0 0.0
        %v241 = vand.u32 %v223, 4294901760
        %242 = vmatpush1.msra.mxu0 %v241
        %243 = vmatprep.subr.mxu0 0.0
        %v244 = vand.u32 %v222, 4294901760
        %245 = vmatpush1.msra.mxu0 %v244
        %246 = vmatprep.subr.mxu0 0.0
        %v247 = vand.u32 %v221, 4294901760
        %248 = vmatpush1.msra.mxu0 %v247
        %249 = vmatprep.subr.mxu0 0.0
        %v250 = vand.u32 %v220, 4294901760
        %251 = vmatpush1.msra.mxu0 %v250
        %252 = vmatprep.subr.mxu0 0.0
        %v253 = vand.u32 %v219, 4294901760
        %254 = vmatpush1.msra.mxu0 %v253
        %255 = vmatprep.subr.mxu0 0.0
        %v256 = vand.u32 %v218, 4294901760
        %257 = vmatpush1.msra.mxu0 %v256
        %258 = vmatprep.subr.mxu0 0.0
        %v259 = vand.u32 %v217, 4294901760
        %260 = vmatpush1.msra.mxu0 %v259
        %261 = vmatprep.subr.mxu0 0.0
        %v262 = vand.u32 %v216, 4294901760
        %263 = vmatpush1.msra.mxu0 %v262
        %264 = vmatprep.subr.mxu0 0.0
        %v265 = vand.u32 %v215, 4294901760
        %266 = vmatpush1.msra.mxu0 %v265
        %267 = vmatprep.subr.mxu0 0.0
        %v268 = vand.u32 %v214, 4294901760
        %269 = vmatpush1.msra.mxu0 %v268
        %270 = vmatprep.subr.mxu0 0.0
        %v271 = vand.u32 %v213, 4294901760
        %272 = vmatpush1.msra.mxu0 %v271
        %273 = vmatprep.subr.mxu0 0.0
        %v274 = vand.u32 %v212, 4294901760
        %275 = vmatpush1.msra.mxu0 %v274
        %276 = vmatprep.subr.mxu0 0.0
        %277 = vmatpush2.msra.mxu0 0.0
        %278 = vmatprep.subr.mxu0 0.0
        %279 = vmatpush2.msra.mxu0 0.0
        %280 = vmatprep.subr.mxu0 0.0
        %281 = vmatpush2.msra.mxu0 0.0
        %282 = vmatprep.subr.mxu0 0.0
        %283 = vmatpush2.msra.mxu0 0.0
        %284 = vmatprep.subr.mxu0 0.0
        %285 = vmatpush2.msra.mxu0 0.0
        %286 = vmatprep.subr.mxu0 0.0
        %287 = vmatpush2.msra.mxu0 0.0
        %288 = vmatprep.subr.mxu0 0.0
        %289 = vmatpush2.msra.mxu0 0.0
        %290 = vmatprep.subr.mxu0 0.0
        %291 = vmatpush2.msra.mxu0 0.0
        %292 = vmatprep.subr.mxu0 0.0
        %293 = vmatpush2.msra.mxu0 0.0
        %294 = vmatprep.subr.mxu0 0.0
        %295 = vmatpush2.msra.mxu0 0.0
        %296 = vmatprep.subr.mxu0 0.0
        %297 = vmatpush2.msra.mxu0 0.0
        %298 = vmatprep.subr.mxu0 0.0
        %299 = vmatpush2.msra.mxu0 0.0
        %300 = vmatprep.subr.mxu0 0.0
        %301 = vmatpush2.msra.mxu0 0.0
        %302 = vmatprep.subr.mxu0 0.0
        %303 = vmatpush2.msra.mxu0 0.0
        %304 = vmatprep.subr.mxu0 0.0
        %305 = vmatpush2.msra.mxu0 0.0
        %306 = vmatprep.subr.mxu0 0.0
        %307 = vmatpush2.msra.mxu0 0.0
        %308 = vmatprep.mubr.f32.mxu0 0.0
        %v309 = vand.u32 %v210, 4294901760
        %v310 = vsub.f32 %v210, %v309
        %v311 = vand.u32 %v310, 4294901760
        %v312 = vsub.f32 %v310, %v311
        %v313 = vand.u32 %v312, 4294901760
        %314 = vmatmul.mubr.f32.gmra.mxu0 %v313
        %v315 = vpop.f32.mrf.mxu0
        %v316 = vadd.f32 0.0, %v315
        %v317 = vpop.f32.mrf.mxu0
        %318 = vmatprep.mubr.f32.mxu0 0.0
        %v319 = vand.u32 %v211, 4294901760
        %v320 = vsub.f32 %v211, %v319
        %v321 = vand.u32 %v320, 4294901760
        %v322 = vsub.f32 %v320, %v321
        %v323 = vand.u32 %v322, 4294901760
        %324 = vmatmul.mubr.f32.gmra.mxu0 %v323
        %v325 = vpop.f32.mrf.mxu0
        %v326 = vadd.f32 0.0, %v325
        %v327 = vpop.f32.mrf.mxu0
        %328 = vdwg.mxu0
        %329 = vmatprep.subr.mxu0 0.0
        %v330 = vand.u32 %v227, 4294901760
        %v331 = vsub.f32 %v227, %v330
        %v332 = vand.u32 %v331, 4294901760
        %v333 = vsub.f32 %v331, %v332
        %v334 = vand.u32 %v333, 4294901760
        %335 = vmatpush1.msra.mxu0 %v334
        %336 = vmatprep.subr.mxu0 0.0
        %v337 = vand.u32 %v226, 4294901760
        %v338 = vsub.f32 %v226, %v337
        %v339 = vand.u32 %v338, 4294901760
        %v340 = vsub.f32 %v338, %v339
        %v341 = vand.u32 %v340, 4294901760
        %342 = vmatpush1.msra.mxu0 %v341
        %343 = vmatprep.subr.mxu0 0.0
        %v344 = vand.u32 %v225, 4294901760
        %v345 = vsub.f32 %v225, %v344
        %v346 = vand.u32 %v345, 4294901760
        %v347 = vsub.f32 %v345, %v346
        %v348 = vand.u32 %v347, 4294901760
        %349 = vmatpush1.msra.mxu0 %v348
        %350 = vmatprep.subr.mxu0 0.0
        %v351 = vand.u32 %v224, 4294901760
        %v352 = vsub.f32 %v224, %v351
        %v353 = vand.u32 %v352, 4294901760
        %v354 = vsub.f32 %v352, %v353
        %v355 = vand.u32 %v354, 4294901760
        %356 = vmatpush1.msra.mxu0 %v355
        %357 = vmatprep.subr.mxu0 0.0
        %v358 = vand.u32 %v223, 4294901760
        %v359 = vsub.f32 %v223, %v358
        %v360 = vand.u32 %v359, 4294901760
        %v361 = vsub.f32 %v359, %v360
        %v362 = vand.u32 %v361, 4294901760
        %363 = vmatpush1.msra.mxu0 %v362
        %364 = vmatprep.subr.mxu0 0.0
        %v365 = vand.u32 %v222, 4294901760
        %v366 = vsub.f32 %v222, %v365
        %v367 = vand.u32 %v366, 4294901760
        %v368 = vsub.f32 %v366, %v367
        %v369 = vand.u32 %v368, 4294901760
        %370 = vmatpush1.msra.mxu0 %v369
        %371 = vmatprep.subr.mxu0 0.0
        %v372 = vand.u32 %v221, 4294901760
        %v373 = vsub.f32 %v221, %v372
        %v374 = vand.u32 %v373, 4294901760
        %v375 = vsub.f32 %v373, %v374
        %v376 = vand.u32 %v375, 4294901760
        %377 = vmatpush1.msra.mxu0 %v376
        %378 = vmatprep.subr.mxu0 0.0
        %v379 = vand.u32 %v220, 4294901760
        %v380 = vsub.f32 %v220, %v379
        %v381 = vand.u32 %v380, 4294901760
        %v382 = vsub.f32 %v380, %v381
        %v383 = vand.u32 %v382, 4294901760
        %384 = vmatpush1.msra.mxu0 %v383
        %385 = vmatprep.subr.mxu0 0.0
        %v386 = vand.u32 %v219, 4294901760
        %v387 = vsub.f32 %v219, %v386
        %v388 = vand.u32 %v387, 4294901760
        %v389 = vsub.f32 %v387, %v388
        %v390 = vand.u32 %v389, 4294901760
        %391 = vmatpush1.msra.mxu0 %v390
        %392 = vmatprep.subr.mxu0 0.0
        %v393 = vand.u32 %v218, 4294901760
        %v394 = vsub.f32 %v218, %v393
        %v395 = vand.u32 %v394, 4294901760
        %v396 = vsub.f32 %v394, %v395
        %v397 = vand.u32 %v396, 4294901760
        %398 = vmatpush1.msra.mxu0 %v397
        %399 = vmatprep.subr.mxu0 0.0
        %v400 = vand.u32 %v217, 4294901760
        %v401 = vsub.f32 %v217, %v400
        %v402 = vand.u32 %v401, 4294901760
        %v403 = vsub.f32 %v401, %v402
        %v404 = vand.u32 %v403, 4294901760
        %405 = vmatpush1.msra.mxu0 %v404
        %406 = vmatprep.subr.mxu0 0.0
        %v407 = vand.u32 %v216, 4294901760
        %v408 = vsub.f32 %v216, %v407
        %v409 = vand.u32 %v408, 4294901760
        %v410 = vsub.f32 %v408, %v409
        %v411 = vand.u32 %v410, 4294901760
        %412 = vmatpush1.msra.mxu0 %v411
        %413 = vmatprep.subr.mxu0 0.0
        %v414 = vand.u32 %v215, 4294901760
        %v415 = vsub.f32 %v215, %v414
        %v416 = vand.u32 %v415, 4294901760
        %v417 = vsub.f32 %v415, %v416
        %v418 = vand.u32 %v417, 4294901760
        %419 = vmatpush1.msra.mxu0 %v418
        %420 = vmatprep.subr.mxu0 0.0
        %v421 = vand.u32 %v214, 4294901760
        %v422 = vsub.f32 %v214, %v421
        %v423 = vand.u32 %v422, 4294901760
        %v424 = vsub.f32 %v422, %v423
        %v425 = vand.u32 %v424, 4294901760
        %426 = vmatpush1.msra.mxu0 %v425
        %427 = vmatprep.subr.mxu0 0.0
        %v428 = vand.u32 %v213, 4294901760
        %v429 = vsub.f32 %v213, %v428
        %v430 = vand.u32 %v429, 4294901760
        %v431 = vsub.f32 %v429, %v430
        %v432 = vand.u32 %v431, 4294901760
        %433 = vmatpush1.msra.mxu0 %v432
        %434 = vmatprep.subr.mxu0 0.0
        %v435 = vand.u32 %v212, 4294901760
        %v436 = vsub.f32 %v212, %v435
        %v437 = vand.u32 %v436, 4294901760
        %v438 = vsub.f32 %v436, %v437
        %v439 = vand.u32 %v438, 4294901760
        %440 = vmatpush1.msra.mxu0 %v439
        %441 = vmatprep.subr.mxu0 0.0
        %442 = vmatpush2.msra.mxu0 0.0
        %443 = vmatprep.subr.mxu0 0.0
        %444 = vmatpush2.msra.mxu0 0.0
        %445 = vmatprep.subr.mxu0 0.0
        %446 = vmatpush2.msra.mxu0 0.0
        %447 = vmatprep.subr.mxu0 0.0
        %448 = vmatpush2.msra.mxu0 0.0
        %449 = vmatprep.subr.mxu0 0.0
        %450 = vmatpush2.msra.mxu0 0.0
        %451 = vmatprep.subr.mxu0 0.0
        %452 = vmatpush2.msra.mxu0 0.0
        %453 = vmatprep.subr.mxu0 0.0
        %454 = vmatpush2.msra.mxu0 0.0
        %455 = vmatprep.subr.mxu0 0.0
        %456 = vmatpush2.msra.mxu0 0.0
        %457 = vmatprep.subr.mxu0 0.0
        %458 = vmatpush2.msra.mxu0 0.0
        %459 = vmatprep.subr.mxu0 0.0
        %460 = vmatpush2.msra.mxu0 0.0
        %461 = vmatprep.subr.mxu0 0.0
        %462 = vmatpush2.msra.mxu0 0.0
        %463 = vmatprep.subr.mxu0 0.0
        %464 = vmatpush2.msra.mxu0 0.0
        %465 = vmatprep.subr.mxu0 0.0
        %466 = vmatpush2.msra.mxu0 0.0
        %467 = vmatprep.subr.mxu0 0.0
        %468 = vmatpush2.msra.mxu0 0.0
        %469 = vmatprep.subr.mxu0 0.0
        %470 = vmatpush2.msra.mxu0 0.0
        %471 = vmatprep.subr.mxu0 0.0
        %472 = vmatpush2.msra.mxu0 0.0
        %473 = vmatprep.mubr.f32.mxu0 0.0
        %v474 = vand.u32 %v210, 4294901760
        %475 = vmatmul.mubr.f32.gmra.mxu0 %v474
        %v476 = vpop.f32.mrf.mxu0
        %v477 = vadd.f32 %v316, %v476
        %v478 = vpop.f32.mrf.mxu0
        %479 = vmatprep.mubr.f32.mxu0 0.0
        %v480 = vand.u32 %v211, 4294901760
        %481 = vmatmul.mubr.f32.gmra.mxu0 %v480
        %v482 = vpop.f32.mrf.mxu0
        %v483 = vadd.f32 %v326, %v482
        %v484 = vpop.f32.mrf.mxu0
        %485 = vdwg.mxu0
        %486 = vmatprep.subr.mxu0 0.0
        %v487 = vand.u32 %v227, 4294901760
        %v488 = vsub.f32 %v227, %v487
        %489 = vmatpush1.msra.mxu0 %v488
        %490 = vmatprep.subr.mxu0 0.0
        %v491 = vand.u32 %v226, 4294901760
        %v492 = vsub.f32 %v226, %v491
        %493 = vmatpush1.msra.mxu0 %v492
        %494 = vmatprep.subr.mxu0 0.0
        %v495 = vand.u32 %v225, 4294901760
        %v496 = vsub.f32 %v225, %v495
        %497 = vmatpush1.msra.mxu0 %v496
        %498 = vmatprep.subr.mxu0 0.0
        %v499 = vand.u32 %v224, 4294901760
        %v500 = vsub.f32 %v224, %v499
        %501 = vmatpush1.msra.mxu0 %v500
        %502 = vmatprep.subr.mxu0 0.0
        %v503 = vand.u32 %v223, 4294901760
        %v504 = vsub.f32 %v223, %v503
        %505 = vmatpush1.msra.mxu0 %v504
        %506 = vmatprep.subr.mxu0 0.0
        %v507 = vand.u32 %v222, 4294901760
        %v508 = vsub.f32 %v222, %v507
        %509 = vmatpush1.msra.mxu0 %v508
        %510 = vmatprep.subr.mxu0 0.0
        %v511 = vand.u32 %v221, 4294901760
        %v512 = vsub.f32 %v221, %v511
        %513 = vmatpush1.msra.mxu0 %v512
        %514 = vmatprep.subr.mxu0 0.0
        %v515 = vand.u32 %v220, 4294901760
        %v516 = vsub.f32 %v220, %v515
        %517 = vmatpush1.msra.mxu0 %v516
        %518 = vmatprep.subr.mxu0 0.0
        %v519 = vand.u32 %v219, 4294901760
        %v520 = vsub.f32 %v219, %v519
        %521 = vmatpush1.msra.mxu0 %v520
        %522 = vmatprep.subr.mxu0 0.0
        %v523 = vand.u32 %v218, 4294901760
        %v524 = vsub.f32 %v218, %v523
        %525 = vmatpush1.msra.mxu0 %v524
        %526 = vmatprep.subr.mxu0 0.0
        %v527 = vand.u32 %v217, 4294901760
        %v528 = vsub.f32 %v217, %v527
        %529 = vmatpush1.msra.mxu0 %v528
        %530 = vmatprep.subr.mxu0 0.0
        %v531 = vand.u32 %v216, 4294901760
        %v532 = vsub.f32 %v216, %v531
        %533 = vmatpush1.msra.mxu0 %v532
        %534 = vmatprep.subr.mxu0 0.0
        %v535 = vand.u32 %v215, 4294901760
        %v536 = vsub.f32 %v215, %v535
        %537 = vmatpush1.msra.mxu0 %v536
        %538 = vmatprep.subr.mxu0 0.0
        %v539 = vand.u32 %v214, 4294901760
        %v540 = vsub.f32 %v214, %v539
        %541 = vmatpush1.msra.mxu0 %v540
        %542 = vmatprep.subr.mxu0 0.0
        %v543 = vand.u32 %v213, 4294901760
        %v544 = vsub.f32 %v213, %v543
        %545 = vmatpush1.msra.mxu0 %v544
        %546 = vmatprep.subr.mxu0 0.0
        %v547 = vand.u32 %v212, 4294901760
        %v548 = vsub.f32 %v212, %v547
        %549 = vmatpush1.msra.mxu0 %v548
        %550 = vmatprep.subr.mxu0 0.0
        %551 = vmatpush2.msra.mxu0 0.0
        %552 = vmatprep.subr.mxu0 0.0
        %553 = vmatpush2.msra.mxu0 0.0
        %554 = vmatprep.subr.mxu0 0.0
        %555 = vmatpush2.msra.mxu0 0.0
        %556 = vmatprep.subr.mxu0 0.0
        %557 = vmatpush2.msra.mxu0 0.0
        %558 = vmatprep.subr.mxu0 0.0
        %559 = vmatpush2.msra.mxu0 0.0
        %560 = vmatprep.subr.mxu0 0.0
        %561 = vmatpush2.msra.mxu0 0.0
        %562 = vmatprep.subr.mxu0 0.0
        %563 = vmatpush2.msra.mxu0 0.0
        %564 = vmatprep.subr.mxu0 0.0
        %565 = vmatpush2.msra.mxu0 0.0
        %566 = vmatprep.subr.mxu0 0.0
        %567 = vmatpush2.msra.mxu0 0.0
        %568 = vmatprep.subr.mxu0 0.0
        %569 = vmatpush2.msra.mxu0 0.0
        %570 = vmatprep.subr.mxu0 0.0
        %571 = vmatpush2.msra.mxu0 0.0
        %572 = vmatprep.subr.mxu0 0.0
        %573 = vmatpush2.msra.mxu0 0.0
        %574 = vmatprep.subr.mxu0 0.0
        %575 = vmatpush2.msra.mxu0 0.0
        %576 = vmatprep.subr.mxu0 0.0
        %577 = vmatpush2.msra.mxu0 0.0
        %578 = vmatprep.subr.mxu0 0.0
        %579 = vmatpush2.msra.mxu0 0.0
        %580 = vmatprep.subr.mxu0 0.0
        %581 = vmatpush2.msra.mxu0 0.0
        %582 = vmatprep.mubr.f32.mxu0 0.0
        %v583 = vand.u32 %v210, 4294901760
        %v584 = vsub.f32 %v210, %v583
        %585 = vmatmul.mubr.f32.gmra.mxu0 %v584
        %v586 = vpop.f32.mrf.mxu0
        %v587 = vadd.f32 %v477, %v586
        %v588 = vpop.f32.mrf.mxu0
        %589 = vmatprep.mubr.f32.mxu0 0.0
        %v590 = vand.u32 %v211, 4294901760
        %v591 = vsub.f32 %v211, %v590
        %592 = vmatmul.mubr.f32.gmra.mxu0 %v591
        %v593 = vpop.f32.mrf.mxu0
        %v594 = vadd.f32 %v483, %v593
        %v595 = vpop.f32.mrf.mxu0
        %596 = vdwg.mxu0
        %597 = vmatprep.subr.mxu0 0.0
        %v598 = vand.u32 %v227, 4294901760
        %599 = vmatpush1.msra.mxu0 %v598
        %600 = vmatprep.subr.mxu0 0.0
        %v601 = vand.u32 %v226, 4294901760
        %602 = vmatpush1.msra.mxu0 %v601
        %603 = vmatprep.subr.mxu0 0.0
        %v604 = vand.u32 %v225, 4294901760
        %605 = vmatpush1.msra.mxu0 %v604
        %606 = vmatprep.subr.mxu0 0.0
        %v607 = vand.u32 %v224, 4294901760
        %608 = vmatpush1.msra.mxu0 %v607
        %609 = vmatprep.subr.mxu0 0.0
        %v610 = vand.u32 %v223, 4294901760
        %611 = vmatpush1.msra.mxu0 %v610
        %612 = vmatprep.subr.mxu0 0.0
        %v613 = vand.u32 %v222, 4294901760
        %614 = vmatpush1.msra.mxu0 %v613
        %615 = vmatprep.subr.mxu0 0.0
        %v616 = vand.u32 %v221, 4294901760
        %617 = vmatpush1.msra.mxu0 %v616
        %618 = vmatprep.subr.mxu0 0.0
        %v619 = vand.u32 %v220, 4294901760
        %620 = vmatpush1.msra.mxu0 %v619
        %621 = vmatprep.subr.mxu0 0.0
        %v622 = vand.u32 %v219, 4294901760
        %623 = vmatpush1.msra.mxu0 %v622
        %624 = vmatprep.subr.mxu0 0.0
        %v625 = vand.u32 %v218, 4294901760
        %626 = vmatpush1.msra.mxu0 %v625
        %627 = vmatprep.subr.mxu0 0.0
        %v628 = vand.u32 %v217, 4294901760
        %629 = vmatpush1.msra.mxu0 %v628
        %630 = vmatprep.subr.mxu0 0.0
        %v631 = vand.u32 %v216, 4294901760
        %632 = vmatpush1.msra.mxu0 %v631
        %633 = vmatprep.subr.mxu0 0.0
        %v634 = vand.u32 %v215, 4294901760
        %635 = vmatpush1.msra.mxu0 %v634
        %636 = vmatprep.subr.mxu0 0.0
        %v637 = vand.u32 %v214, 4294901760
        %638 = vmatpush1.msra.mxu0 %v637
        %639 = vmatprep.subr.mxu0 0.0
        %v640 = vand.u32 %v213, 4294901760
        %641 = vmatpush1.msra.mxu0 %v640
        %642 = vmatprep.subr.mxu0 0.0
        %v643 = vand.u32 %v212, 4294901760
        %644 = vmatpush1.msra.mxu0 %v643
        %645 = vmatprep.subr.mxu0 0.0
        %646 = vmatpush2.msra.mxu0 0.0
        %647 = vmatprep.subr.mxu0 0.0
        %648 = vmatpush2.msra.mxu0 0.0
        %649 = vmatprep.subr.mxu0 0.0
        %650 = vmatpush2.msra.mxu0 0.0
        %651 = vmatprep.subr.mxu0 0.0
        %652 = vmatpush2.msra.mxu0 0.0
        %653 = vmatprep.subr.mxu0 0.0
        %654 = vmatpush2.msra.mxu0 0.0
        %655 = vmatprep.subr.mxu0 0.0
        %656 = vmatpush2.msra.mxu0 0.0
        %657 = vmatprep.subr.mxu0 0.0
        %658 = vmatpush2.msra.mxu0 0.0
        %659 = vmatprep.subr.mxu0 0.0
        %660 = vmatpush2.msra.mxu0 0.0
        %661 = vmatprep.subr.mxu0 0.0
        %662 = vmatpush2.msra.mxu0 0.0
        %663 = vmatprep.subr.mxu0 0.0
        %664 = vmatpush2.msra.mxu0 0.0
        %665 = vmatprep.subr.mxu0 0.0
        %666 = vmatpush2.msra.mxu0 0.0
        %667 = vmatprep.subr.mxu0 0.0
        %668 = vmatpush2.msra.mxu0 0.0
        %669 = vmatprep.subr.mxu0 0.0
        %670 = vmatpush2.msra.mxu0 0.0
        %671 = vmatprep.subr.mxu0 0.0
        %672 = vmatpush2.msra.mxu0 0.0
        %673 = vmatprep.subr.mxu0 0.0
        %674 = vmatpush2.msra.mxu0 0.0
        %675 = vmatprep.subr.mxu0 0.0
        %676 = vmatpush2.msra.mxu0 0.0
        %677 = vmatprep.mubr.f32.mxu0 0.0
        %v678 = vand.u32 %v210, 4294901760
        %v679 = vsub.f32 %v210, %v678
        %v680 = vand.u32 %v679, 4294901760
        %681 = vmatmul.mubr.f32.gmra.mxu0 %v680
        %v682 = vpop.f32.mrf.mxu0
        %v683 = vadd.f32 %v587, %v682
        %v684 = vpop.f32.mrf.mxu0
        %685 = vmatprep.mubr.f32.mxu0 0.0
        %v686 = vand.u32 %v211, 4294901760
        %v687 = vsub.f32 %v211, %v686
        %v688 = vand.u32 %v687, 4294901760
        %689 = vmatmul.mubr.f32.gmra.mxu0 %v688
        %v690 = vpop.f32.mrf.mxu0
        %v691 = vadd.f32 %v594, %v690
        %v692 = vpop.f32.mrf.mxu0
        %693 = vdwg.mxu0
        %694 = vmatprep.subr.mxu0 0.0
        %v695 = vand.u32 %v227, 4294901760
        %v696 = vsub.f32 %v227, %v695
        %v697 = vand.u32 %v696, 4294901760
        %698 = vmatpush1.msra.mxu0 %v697
        %699 = vmatprep.subr.mxu0 0.0
        %v700 = vand.u32 %v226, 4294901760
        %v701 = vsub.f32 %v226, %v700
        %v702 = vand.u32 %v701, 4294901760
        %703 = vmatpush1.msra.mxu0 %v702
        %704 = vmatprep.subr.mxu0 0.0
        %v705 = vand.u32 %v225, 4294901760
        %v706 = vsub.f32 %v225, %v705
        %v707 = vand.u32 %v706, 4294901760
        %708 = vmatpush1.msra.mxu0 %v707
        %709 = vmatprep.subr.mxu0 0.0
        %v710 = vand.u32 %v224, 4294901760
        %v711 = vsub.f32 %v224, %v710
        %v712 = vand.u32 %v711, 4294901760
        %713 = vmatpush1.msra.mxu0 %v712
        %714 = vmatprep.subr.mxu0 0.0
        %v715 = vand.u32 %v223, 4294901760
        %v716 = vsub.f32 %v223, %v715
        %v717 = vand.u32 %v716, 4294901760
        %718 = vmatpush1.msra.mxu0 %v717
        %719 = vmatprep.subr.mxu0 0.0
        %v720 = vand.u32 %v222, 4294901760
        %v721 = vsub.f32 %v222, %v720
        %v722 = vand.u32 %v721, 4294901760
        %723 = vmatpush1.msra.mxu0 %v722
        %724 = vmatprep.subr.mxu0 0.0
        %v725 = vand.u32 %v221, 4294901760
        %v726 = vsub.f32 %v221, %v725
        %v727 = vand.u32 %v726, 4294901760
        %728 = vmatpush1.msra.mxu0 %v727
        %729 = vmatprep.subr.mxu0 0.0
        %v730 = vand.u32 %v220, 4294901760
        %v731 = vsub.f32 %v220, %v730
        %v732 = vand.u32 %v731, 4294901760
        %733 = vmatpush1.msra.mxu0 %v732
        %734 = vmatprep.subr.mxu0 0.0
        %v735 = vand.u32 %v219, 4294901760
        %v736 = vsub.f32 %v219, %v735
        %v737 = vand.u32 %v736, 4294901760
        %738 = vmatpush1.msra.mxu0 %v737
        %739 = vmatprep.subr.mxu0 0.0
        %v740 = vand.u32 %v218, 4294901760
        %v741 = vsub.f32 %v218, %v740
        %v742 = vand.u32 %v741, 4294901760
        %743 = vmatpush1.msra.mxu0 %v742
        %744 = vmatprep.subr.mxu0 0.0
        %v745 = vand.u32 %v217, 4294901760
        %v746 = vsub.f32 %v217, %v745
        %v747 = vand.u32 %v746, 4294901760
        %748 = vmatpush1.msra.mxu0 %v747
        %749 = vmatprep.subr.mxu0 0.0
        %v750 = vand.u32 %v216, 4294901760
        %v751 = vsub.f32 %v216, %v750
        %v752 = vand.u32 %v751, 4294901760
        %753 = vmatpush1.msra.mxu0 %v752
        %754 = vmatprep.subr.mxu0 0.0
        %v755 = vand.u32 %v215, 4294901760
        %v756 = vsub.f32 %v215, %v755
        %v757 = vand.u32 %v756, 4294901760
        %758 = vmatpush1.msra.mxu0 %v757
        %759 = vmatprep.subr.mxu0 0.0
        %v760 = vand.u32 %v214, 4294901760
        %v761 = vsub.f32 %v214, %v760
        %v762 = vand.u32 %v761, 4294901760
        %763 = vmatpush1.msra.mxu0 %v762
        %764 = vmatprep.subr.mxu0 0.0
        %v765 = vand.u32 %v213, 4294901760
        %v766 = vsub.f32 %v213, %v765
        %v767 = vand.u32 %v766, 4294901760
        %768 = vmatpush1.msra.mxu0 %v767
        %769 = vmatprep.subr.mxu0 0.0
        %v770 = vand.u32 %v212, 4294901760
        %v771 = vsub.f32 %v212, %v770
        %v772 = vand.u32 %v771, 4294901760
        %773 = vmatpush1.msra.mxu0 %v772
        %774 = vmatprep.subr.mxu0 0.0
        %775 = vmatpush2.msra.mxu0 0.0
        %776 = vmatprep.subr.mxu0 0.0
        %777 = vmatpush2.msra.mxu0 0.0
        %778 = vmatprep.subr.mxu0 0.0
        %779 = vmatpush2.msra.mxu0 0.0
        %780 = vmatprep.subr.mxu0 0.0
        %781 = vmatpush2.msra.mxu0 0.0
        %782 = vmatprep.subr.mxu0 0.0
        %783 = vmatpush2.msra.mxu0 0.0
        %784 = vmatprep.subr.mxu0 0.0
        %785 = vmatpush2.msra.mxu0 0.0
        %786 = vmatprep.subr.mxu0 0.0
        %787 = vmatpush2.msra.mxu0 0.0
        %788 = vmatprep.subr.mxu0 0.0
        %789 = vmatpush2.msra.mxu0 0.0
        %790 = vmatprep.subr.mxu0 0.0
        %791 = vmatpush2.msra.mxu0 0.0
        %792 = vmatprep.subr.mxu0 0.0
        %793 = vmatpush2.msra.mxu0 0.0
        %794 = vmatprep.subr.mxu0 0.0
        %795 = vmatpush2.msra.mxu0 0.0
        %796 = vmatprep.subr.mxu0 0.0
        %797 = vmatpush2.msra.mxu0 0.0
        %798 = vmatprep.subr.mxu0 0.0
        %799 = vmatpush2.msra.mxu0 0.0
        %800 = vmatprep.subr.mxu0 0.0
        %801 = vmatpush2.msra.mxu0 0.0
        %802 = vmatprep.subr.mxu0 0.0
        %803 = vmatpush2.msra.mxu0 0.0
        %804 = vmatprep.subr.mxu0 0.0
        %805 = vmatpush2.msra.mxu0 0.0
        %806 = vmatprep.mubr.f32.mxu0 0.0
        %v807 = vand.u32 %v210, 4294901760
        %808 = vmatmul.mubr.f32.gmra.mxu0 %v807
        %v809 = vpop.f32.mrf.mxu0
        %v810 = vadd.f32 %v683, %v809
        %v811 = vpop.f32.mrf.mxu0
        %812 = vmatprep.mubr.f32.mxu0 0.0
        %v813 = vand.u32 %v211, 4294901760
        %814 = vmatmul.mubr.f32.gmra.mxu0 %v813
        %v815 = vpop.f32.mrf.mxu0
        %v816 = vadd.f32 %v691, %v815
        %v817 = vpop.f32.mrf.mxu0
        %818 = vdwg.mxu0
        %819 = vmatprep.subr.mxu0 0.0
        %v820 = vand.u32 %v227, 4294901760
        %821 = vmatpush1.msra.mxu0 %v820
        %822 = vmatprep.subr.mxu0 0.0
        %v823 = vand.u32 %v226, 4294901760
        %824 = vmatpush1.msra.mxu0 %v823
        %825 = vmatprep.subr.mxu0 0.0
        %v826 = vand.u32 %v225, 4294901760
        %827 = vmatpush1.msra.mxu0 %v826
        %828 = vmatprep.subr.mxu0 0.0
        %v829 = vand.u32 %v224, 4294901760
        %830 = vmatpush1.msra.mxu0 %v829
        %831 = vmatprep.subr.mxu0 0.0
        %v832 = vand.u32 %v223, 4294901760
        %833 = vmatpush1.msra.mxu0 %v832
        %834 = vmatprep.subr.mxu0 0.0
        %v835 = vand.u32 %v222, 4294901760
        %836 = vmatpush1.msra.mxu0 %v835
        %837 = vmatprep.subr.mxu0 0.0
        %v838 = vand.u32 %v221, 4294901760
        %839 = vmatpush1.msra.mxu0 %v838
        %840 = vmatprep.subr.mxu0 0.0
        %v841 = vand.u32 %v220, 4294901760
        %842 = vmatpush1.msra.mxu0 %v841
        %843 = vmatprep.subr.mxu0 0.0
        %v844 = vand.u32 %v219, 4294901760
        %845 = vmatpush1.msra.mxu0 %v844
        %846 = vmatprep.subr.mxu0 0.0
        %v847 = vand.u32 %v218, 4294901760
        %848 = vmatpush1.msra.mxu0 %v847
        %849 = vmatprep.subr.mxu0 0.0
        %v850 = vand.u32 %v217, 4294901760
        %851 = vmatpush1.msra.mxu0 %v850
        %852 = vmatprep.subr.mxu0 0.0
        %v853 = vand.u32 %v216, 4294901760
        %854 = vmatpush1.msra.mxu0 %v853
        %855 = vmatprep.subr.mxu0 0.0
        %v856 = vand.u32 %v215, 4294901760
        %857 = vmatpush1.msra.mxu0 %v856
        %858 = vmatprep.subr.mxu0 0.0
        %v859 = vand.u32 %v214, 4294901760
        %860 = vmatpush1.msra.mxu0 %v859
        %861 = vmatprep.subr.mxu0 0.0
        %v862 = vand.u32 %v213, 4294901760
        %863 = vmatpush1.msra.mxu0 %v862
        %864 = vmatprep.subr.mxu0 0.0
        %v865 = vand.u32 %v212, 4294901760
        %866 = vmatpush1.msra.mxu0 %v865
        %867 = vmatprep.subr.mxu0 0.0
        %868 = vmatpush2.msra.mxu0 0.0
        %869 = vmatprep.subr.mxu0 0.0
        %870 = vmatpush2.msra.mxu0 0.0
        %871 = vmatprep.subr.mxu0 0.0
        %872 = vmatpush2.msra.mxu0 0.0
        %873 = vmatprep.subr.mxu0 0.0
        %874 = vmatpush2.msra.mxu0 0.0
        %875 = vmatprep.subr.mxu0 0.0
        %876 = vmatpush2.msra.mxu0 0.0
        %877 = vmatprep.subr.mxu0 0.0
        %878 = vmatpush2.msra.mxu0 0.0
        %879 = vmatprep.subr.mxu0 0.0
        %880 = vmatpush2.msra.mxu0 0.0
        %881 = vmatprep.subr.mxu0 0.0
        %882 = vmatpush2.msra.mxu0 0.0
        %883 = vmatprep.subr.mxu0 0.0
        %884 = vmatpush2.msra.mxu0 0.0
        %885 = vmatprep.subr.mxu0 0.0
        %886 = vmatpush2.msra.mxu0 0.0
        %887 = vmatprep.subr.mxu0 0.0
        %888 = vmatpush2.msra.mxu0 0.0
        %889 = vmatprep.subr.mxu0 0.0
        %890 = vmatpush2.msra.mxu0 0.0
        %891 = vmatprep.subr.mxu0 0.0
        %892 = vmatpush2.msra.mxu0 0.0
        %893 = vmatprep.subr.mxu0 0.0
        %894 = vmatpush2.msra.mxu0 0.0
        %895 = vmatprep.subr.mxu0 0.0
        %896 = vmatpush2.msra.mxu0 0.0
        %897 = vmatprep.subr.mxu0 0.0
        %898 = vmatpush2.msra.mxu0 0.0
        %899 = vmatprep.mubr.f32.mxu0 0.0
        %v900 = vand.u32 %v210, 4294901760
        %901 = vmatmul.mubr.f32.gmra.mxu0 %v900
        %v902 = vpop.f32.mrf.mxu0
        %v903 = vadd.f32 %v810, %v902
        %v904 = vpop.f32.mrf.mxu0
        %905 = vmatprep.mubr.f32.mxu0 0.0
        %v906 = vand.u32 %v211, 4294901760
        %907 = vmatmul.mubr.f32.gmra.mxu0 %v906
        %v908 = vpop.f32.mrf.mxu0
        %v909 = vadd.f32 %v816, %v908
        %v910 = vpop.f32.mrf.mxu0
        %911 = vdwg.mxu0
        %912 = vst [vmem:[%s152] sm:$0xff] %v903
        %913 = vst [vmem:[%s152 + $0x8] sm:$0xff] %v909
        %s914 = sand.u32 %s72, 1
        %s915 = scalar_lea.sflag [#allocation4], %s914
        %s916 = sand.u32 %s72, 1
        %s917 = smul.addr %s916, 16
        %s918 = scalar_lea.vmem [#allocation5], %s917
        // Predicated region
        $region33: #{tpu_custom_call.1} parent=27 // pred_check
          %p919 = pneg %p82
        $region34: #{tpu_custom_call.1} parent=27 // pred_check_branch
          %921 = sbr.rel (%p919) target = $region36
        $region35: #{tpu_custom_call.1} parent=27 // pred_region
          %s922 = smul.u32 2, %s17
          %s924 = ssub.s32 256, 256
          %925 = vsyncadd %s915, %s924
          %s926 = smul.addr %s922, 128
          %s927 = scalar_lea.hbm %s2, %s926
          %s928 = sshll.u32 %s918, 4
          %s929 = int_to_ptr.vmem [resolvable:$true] %s928
          %934 = dma.vmem_to_hbm [thread:$0]  %s929, 256, %s927, %s915, 128, 128, 8
        $region36: #{tpu_custom_call.1} parent=27 // pred_fallthru
          _
      $region28: #{tpu_custom_call.1} parent=5 // pred_fallthru
        _
      %p935 = scmp.le.s32.totalorder 2, %s12
      // Predicated region
      $region37: #{tpu_custom_call.1} parent=5 // pred_check
        %p936 = pneg %p935
      $region38: #{tpu_custom_call.1} parent=5 // pred_check_branch
        %938 = sbr.rel (%p936) target = $region40
      $region39: #{tpu_custom_call.1} parent=5 // pred_region
        %s939 = ssub.s32 %s12, 2
        // Predicated region
        $region41: #{tpu_custom_call.1} parent=39 // pred_check
          %p940 = pneg %p88
        $region42: #{tpu_custom_call.1} parent=39 // pred_check_branch
          %942 = sbr.rel (%p940) target = $region44
        $region43: #{tpu_custom_call.1} parent=39 // pred_region
          %s943 = sand.u32 %s73, 1
          %s944 = scalar_lea.sflag [#allocation4], %s943
          %s945 = sand.u32 %s73, 1
          %s946 = smul.addr %s945, 16
          %s947 = scalar_lea.vmem [#allocation5], %s946
          %948 = dma.done %s944, 256
        $region44: #{tpu_custom_call.1} parent=39 // pred_fallthru
          _
      $region40: #{tpu_custom_call.1} parent=5 // pred_fallthru
        _
    $region6: #{tpu_custom_call.1} parent=1 // loop_footer
      %s16 = sadd.s32 1, %s12
    $region7: #{tpu_custom_call.1} parent=1 // loop_footer_branch
      %11 = sbr.rel target = $region3
    $region8: #{tpu_custom_call.1} parent=1 // loop_exit
      _
    %949 = vsyncpa [#allocation3], 1
    %s950 = scalar_lea.sflag [#allocation3], 1
    %951 = vsyncpa %s950, 1
    %952 = vsyncpa [#allocation4], 1
    %s953 = scalar_lea.sflag [#allocation4], 1
    %954 = vsyncpa %s953, 1

</llo_original>
